<compile_context>
chip_gen: v7x
topology: tpu7x:2x2x1
jax: 0.10.0
libtpu: 0.0.40
codegen_flags: <defaults>
</compile_context>

<pallas_src>
import math

import jax
import jax.numpy as jnp
from jax import lax
from jax.experimental import pallas as pl
from jax.experimental.pallas import tpu as pltpu

SELU_ALPHA = 1.6732632423543772848170429916717
SELU_SCALE = 1.0507009873554804934193349852946


def _round_up(x: int, m: int) -> int:
    return ((x + m - 1) // m) * m


def _conv_prenet_kernel(x_ref, w_ref, b_ref, o_ref):
    # x_ref: (tM, Kc_pad)    im2col rows for this M tile
    # w_ref: (Kc_pad, tN)    folded conv weight tile
    # b_ref: (1, tN)         bias tile
    # o_ref: (tM, tN)        output tile
    acc = jnp.dot(x_ref[...], w_ref[...], preferred_element_type=jnp.float32)
    acc = acc + b_ref[...].astype(jnp.float32)
    # SELU.  exp() runs on the EUP slot (free under MXU-bound regime); the
    # select/mul are VPU filler.
    neg = SELU_ALPHA * (jnp.exp(acc) - 1.0)
    y = SELU_SCALE * jnp.where(acc > 0, acc, neg)
    o_ref[...] = y.astype(o_ref.dtype)


def conv_prenet(x, weight, bias, kernel_size):
    """x: (B, C_in, L); weight: (C_out, C_in, K); bias: (C_out,) -> (B, C_out, L)."""
    B, C_in, L = x.shape
    C_out = weight.shape[0]
    K = kernel_size
    assert K % 2 == 1, "kernel_size must be odd (matches ConvPrenet contract)"
    pad = (K - 1) // 2

    # ---- wrapper glue: reflection pad, channels-last, im2col ---------------
    x_pad = jnp.pad(x, ((0, 0), (0, 0), (pad, pad)), mode="reflect")  # (B, C_in, L+2p)
    x_nlc = jnp.transpose(x_pad, (0, 2, 1))                           # (B, L+2p, C_in)
    # cols[b, l, k*C_in + i] = x_nlc[b, l+k, i]
    cols = jnp.concatenate([x_nlc[:, k:k + L, :] for k in range(K)], axis=-1)
    Kc = K * C_in
    M = B * L
    cols = cols.reshape(M, Kc)

    # w_mat[k*C_in + i, o] = weight[o, i, k]
    w_mat = jnp.transpose(weight, (2, 1, 0)).reshape(Kc, C_out)

    # ---- TPU-friendly padding / tiling -------------------------------------
    LANE = 128
    Kc_pad = _round_up(Kc, LANE)          # lane-dense x loads, aligned weight rows
    Cout_pad = _round_up(C_out, LANE)     # lane-dense output stores

    tN = math.gcd(Cout_pad, 256)          # 128 or 256, always divides Cout_pad

    # Pick tM: as large as possible (fewer grid steps, amortize ~0.35us/step)
    # while keeping double-buffered block VMEM comfortably under the default
    # scoped limit on every chip generation.
    tM = 256
    bytes_per_block = 4 * (tM * Kc_pad + Kc_pad * tN + tN + tM * tN)
    while tM > 8 and 2 * bytes_per_block > (12 << 20):
        tM //= 2
        bytes_per_block = 4 * (tM * Kc_pad + Kc_pad * tN + tN + tM * tN)
    tM = min(tM, _round_up(M, 8))
    M_pad = _round_up(M, tM)

    cols_p = jnp.pad(cols, ((0, M_pad - M), (0, Kc_pad - Kc)))
    w_p = jnp.pad(w_mat, ((0, Kc_pad - Kc), (0, Cout_pad - C_out)))
    b_p = jnp.pad(bias, (0, Cout_pad - C_out)).reshape(1, Cout_pad)

    grid = (M_pad // tM, Cout_pad // tN)

    out = pl.pallas_call(
        _conv_prenet_kernel,
        out_shape=jax.ShapeDtypeStruct((M_pad, Cout_pad), x.dtype),
        grid_spec=pltpu.PrefetchScalarGridSpec(
            num_scalar_prefetch=0,
            grid=grid,
            in_specs=[
                pl.BlockSpec((tM, Kc_pad), lambda m, n: (m, 0)),
                pl.BlockSpec((Kc_pad, tN), lambda m, n: (0, n)),
                pl.BlockSpec((1, tN), lambda m, n: (0, n)),
            ],
            out_specs=pl.BlockSpec((tM, tN), lambda m, n: (m, n)),
        ),
        compiler_params=pltpu.CompilerParams(
            dimension_semantics=("parallel", "parallel"),
        ),
    )(cols_p, w_p, b_p)

    # ---- strip padding, back to PyTorch layout (B, C_out, L) ---------------
    out = out[:M, :C_out].reshape(B, L, C_out)
    return jnp.transpose(out, (0, 2, 1))


def _reference(x, weight, bias, kernel_size):
    pad = (kernel_size - 1) // 2
    x_pad = jnp.pad(x, ((0, 0), (0, 0), (pad, pad)), mode="reflect")
    y = lax.conv_general_dilated(
        x_pad, weight, window_strides=(1,), padding="VALID",
        dimension_numbers=("NCH", "OIH", "NCH"),
    )
    y = y + bias[None, :, None]
    return jax.nn.selu(y)


if __name__ == "__main__":
    B, C_in, C_out, L, K = 2, 4, 8, 16, 3

    key = jax.random.PRNGKey(0)
    k_x, k_w, k_b = jax.random.split(key, 3)

    x = jax.random.normal(k_x, (B, C_in, L), dtype=jnp.float32)

    # Conv1d-style init: U(-bound, bound), bound = 1/sqrt(C_in*K)
    bound = 1.0 / math.sqrt(C_in * K)
    weight = jax.random.uniform(k_w, (C_out, C_in, K), dtype=jnp.float32,
                                minval=-bound, maxval=bound)
    bias = jax.random.uniform(k_b, (C_out,), dtype=jnp.float32,
                              minval=-bound, maxval=bound)

    y = conv_prenet(x, weight, bias, K)
    y = jax.block_until_ready(y)

    y_ref = _reference(x, weight, bias, K)
    assert y.shape == (B, C_out, L)
    assert jnp.allclose(y, y_ref, atol=1e-5, rtol=1e-5), "mismatch vs reference"

    print("KERNEL_OK")
</pallas_src>

<mosaic_0001>
module attributes {stable_mosaic.version = 11 : i64} {
  func.func @_conv_prenet_kernel(%arg0: i32, %arg1: i32, %arg2: memref<32x128xf32, #tpu.memory_space<vmem>>, %arg3: memref<128x128xf32, #tpu.memory_space<vmem>>, %arg4: memref<1x128xf32, #tpu.memory_space<vmem>>, %arg5: memref<32x128xf32, #tpu.memory_space<vmem>>) attributes {dimension_semantics = [#tpu.dimension_semantics<parallel>, #tpu.dimension_semantics<parallel>], iteration_bounds = array<i64: 1, 1>, scalar_prefetch = 0 : i64, scratch_operands = 0 : i64, tpu.core_type = #tpu.core_type<tc>, window_params = [{transform_indices = @transform_0, window_bounds = array<i64: 32, 128>}, {transform_indices = @transform_1, window_bounds = array<i64: 128, 128>}, {transform_indices = @transform_2, window_bounds = array<i64: 1, 128>}, {transform_indices = @transform_3, window_bounds = array<i64: 32, 128>}]} {
    %c0 = arith.constant 0 : index
    %c0_0 = arith.constant 0 : index
    %0 = vector.load %arg2[%c0, %c0_0] : memref<32x128xf32, #tpu.memory_space<vmem>>, vector<32x128xf32>
    %c0_1 = arith.constant 0 : index
    %c0_2 = arith.constant 0 : index
    %1 = vector.load %arg3[%c0_1, %c0_2] : memref<128x128xf32, #tpu.memory_space<vmem>>, vector<128x128xf32>
    %cst = arith.constant dense<0.000000e+00> : vector<32x128xf32>
    %2 = tpu.matmul %0, %1, %cst {dimension_numbers = #tpu.dot_dimension_numbers<[1], [0], [0], [1], [0, 0, 1, 1], [], []>} : vector<32x128xf32>, vector<128x128xf32>, vector<32x128xf32> -> vector<32x128xf32>
    %c0_3 = arith.constant 0 : index
    %c0_4 = arith.constant 0 : index
    %3 = vector.load %arg4[%c0_3, %c0_4] : memref<1x128xf32, #tpu.memory_space<vmem>>, vector<1x128xf32>
    %4 = vector.broadcast %3 : vector<1x128xf32> to vector<32x128xf32>
    %5 = arith.addf %2, %4 : vector<32x128xf32>
    %6 = math.exp %5 : vector<32x128xf32>
    %cst_5 = arith.constant 1.000000e+00 : f32
    %7 = vector.broadcast %cst_5 : f32 to vector<32x128xf32>
    %8 = arith.subf %6, %7 : vector<32x128xf32>
    %cst_6 = arith.constant 1.67326319 : f32
    %9 = vector.broadcast %cst_6 : f32 to vector<32x128xf32>
    %10 = arith.mulf %9, %8 : vector<32x128xf32>
    %cst_7 = arith.constant 0.000000e+00 : f32
    %11 = vector.broadcast %cst_7 : f32 to vector<32x128xf32>
    %12 = arith.cmpf ogt, %5, %11 : vector<32x128xf32>
    %13 = arith.select %12, %5, %10 : vector<32x128xi1>, vector<32x128xf32>
    %cst_8 = arith.constant 1.05070102 : f32
    %14 = vector.broadcast %cst_8 : f32 to vector<32x128xf32>
    %15 = arith.mulf %14, %13 : vector<32x128xf32>
    %c0_9 = arith.constant 0 : index
    %c0_10 = arith.constant 0 : index
    %16 = vector.load %arg5[%c0_9, %c0_10] : memref<32x128xf32, #tpu.memory_space<vmem>>, vector<32x128xf32>
    tpu.vector_store %arg5[%c0_9, %c0_10], %15 {strides = array<i32>} : memref<32x128xf32, #tpu.memory_space<vmem>>, vector<32x128xf32>,
    return
  }
  func.func @transform_0(%arg0: i32, %arg1: i32) -> (i32, i32) {
    %c0_i32 = arith.constant 0 : i32
    %c0_i32_0 = arith.constant 0 : i32
    return %arg0, %c0_i32 : i32, i32
  }
  func.func @transform_1(%arg0: i32, %arg1: i32) -> (i32, i32) {
    %c0_i32 = arith.constant 0 : i32
    %c0_i32_0 = arith.constant 0 : i32
    return %c0_i32, %arg1 : i32, i32
  }
  func.func @transform_2(%arg0: i32, %arg1: i32) -> (i32, i32) {
    %c0_i32 = arith.constant 0 : i32
    %c0_i32_0 = arith.constant 0 : i32
    return %c0_i32, %arg1 : i32, i32
  }
  func.func @transform_3(%arg0: i32, %arg1: i32) -> (i32, i32) {
    %c0_i32 = arith.constant 0 : i32
    return %arg0, %arg1 : i32, i32
  }
}

</mosaic_0001>

<llo_original>
// kernel: tpu_custom_call.1
$region0: #{tpu_custom_call.1}
  #allocation0 [shape = 'u32[]', space=smem, size = 0x4, offset = 0x4, fixed_abs, tag = 'smem constant byte address 0x4 - core index']
  #allocation1 [shape = 'u32[144,128]{1,0:T(1,128)}', space=vmem, size = 0x12000, scoped, tag = 'internal scratch']
  %s0 = inlined_call_operand.hbm [shape: f32[32,128], index: 0, kind: input, shape index: {}]
  %s1 = inlined_call_operand.hbm [shape: f32[128,128], index: 1, kind: input, shape index: {}]
  %s2 = inlined_call_operand.vmem [shape: f32[1,128], index: 2, kind: input, shape index: {}]
  %s3 = inlined_call_operand.hbm [shape: f32[32,128], index: 3, kind: output, shape index: {}]
  %s4 = sld [smem:[#allocation0]]
  $region30: #{tpu_custom_call.1} parent=0
    _
  %s6 = ssub.s32 1, %s4
  %s7 = scalar_select 0, %s6, %s4
  $region1: #{tpu_custom_call.1} parent=0
    #allocation2 [shape = 'u8[16384]{0}', space=vmem, size = 0x4000, scoped, tag = 'input window, operand 0, single buffered']
    #allocation3 [shape = 's32[1]{0}', space=sflag, size = 0x4, scoped, tag = 'scoped memory for tpu_custom_call.1']
    #allocation4 [shape = 's32[1]{0}', space=sflag, size = 0x4, scoped, tag = 'scoped memory for tpu_custom_call.1']
    #allocation5 [shape = 'u8[65536]{0}', space=vmem, size = 0x10000, scoped, tag = 'input window, operand 1, single buffered']
    #allocation6 [shape = 's32[1]{0}', space=sflag, size = 0x4, scoped, tag = 'scoped memory for tpu_custom_call.1']
    #allocation7 [shape = 'u8[16384]{0}', space=vmem, size = 0x4000, scoped, tag = 'output window, operand 0, single buffered']
    %8 = vsyncpa [#allocation3], 0
    %9 = vsyncpa [#allocation6], 0
    %10 = vsyncpa [#allocation4], 0
    // Predicated region
    $region2: #{tpu_custom_call.1} parent=1 // pred_check
      _
    $region3: #{tpu_custom_call.1} parent=1 // pred_check_branch
      %12 = sbr.rel (0) target = $region5
    $region4: #{tpu_custom_call.1} parent=1 // pred_region
      %s14 = ssub.s32 512, 512
      %15 = vsyncadd [#allocation3], %s14
      %s16 = sshll.u32 [#allocation2], 4
      %s17 = int_to_ptr.vmem [resolvable:$true] %s16
      %22 = dma.hbm_to_vmem [thread:$0]  %s0, 512, %s17, [#allocation3], 128, 128, 8
    $region5: #{tpu_custom_call.1} parent=1 // pred_fallthru
      _
    // Predicated region
    $region6: #{tpu_custom_call.1} parent=1 // pred_check
      _
    $region7: #{tpu_custom_call.1} parent=1 // pred_check_branch
      %24 = sbr.rel (0) target = $region9
    $region8: #{tpu_custom_call.1} parent=1 // pred_region
      %s26 = ssub.s32 2048, 2048
      %27 = vsyncadd [#allocation6], %s26
      %s28 = sshll.u32 [#allocation5], 4
      %s29 = int_to_ptr.vmem [resolvable:$true] %s28
      %34 = dma.hbm_to_vmem [thread:$0]  %s1, 2048, %s29, [#allocation6], 128, 128, 8
    $region9: #{tpu_custom_call.1} parent=1 // pred_fallthru
      _
    // Predicated region
    $region10: #{tpu_custom_call.1} parent=1 // pred_check
      _
    $region11: #{tpu_custom_call.1} parent=1 // pred_check_branch
      %36 = sbr.rel (0) target = $region13
    $region12: #{tpu_custom_call.1} parent=1 // pred_region
      _
    $region13: #{tpu_custom_call.1} parent=1 // pred_fallthru
      _
    // Predicated region
    $region14: #{tpu_custom_call.1} parent=1 // pred_check
      _
    $region15: #{tpu_custom_call.1} parent=1 // pred_check_branch
      %38 = sbr.rel (0) target = $region17
    $region16: #{tpu_custom_call.1} parent=1 // pred_region
      %39 = dma.done [#allocation3], 512
    $region17: #{tpu_custom_call.1} parent=1 // pred_fallthru
      _
    // Predicated region
    $region18: #{tpu_custom_call.1} parent=1 // pred_check
      _
    $region19: #{tpu_custom_call.1} parent=1 // pred_check_branch
      %41 = sbr.rel (0) target = $region21
    $region20: #{tpu_custom_call.1} parent=1 // pred_region
      %42 = dma.done [#allocation6], 2048
    $region21: #{tpu_custom_call.1} parent=1 // pred_fallthru
      _
    %v43 = vld [vmem:[#allocation2] sm:$0xff]
    %v44 = vld [vmem:[#allocation2 + $0x8] sm:$0xff]
    %v45 = vld [vmem:[#allocation2 + $0x10] sm:$0xff]
    %v46 = vld [vmem:[#allocation2 + $0x18] sm:$0xff]
    %v47 = vld [vmem:[#allocation5] sm:$0xff]
    %v48 = vld [vmem:[#allocation5 + $0x8] sm:$0xff]
    %v49 = vld [vmem:[#allocation5 + $0x10] sm:$0xff]
    %v50 = vld [vmem:[#allocation5 + $0x18] sm:$0xff]
    %v51 = vld [vmem:[#allocation5 + $0x20] sm:$0xff]
    %v52 = vld [vmem:[#allocation5 + $0x28] sm:$0xff]
    %v53 = vld [vmem:[#allocation5 + $0x30] sm:$0xff]
    %v54 = vld [vmem:[#allocation5 + $0x38] sm:$0xff]
    %v55 = vld [vmem:[#allocation5 + $0x40] sm:$0xff]
    %v56 = vld [vmem:[#allocation5 + $0x48] sm:$0xff]
    %v57 = vld [vmem:[#allocation5 + $0x50] sm:$0xff]
    %v58 = vld [vmem:[#allocation5 + $0x58] sm:$0xff]
    %v59 = vld [vmem:[#allocation5 + $0x60] sm:$0xff]
    %v60 = vld [vmem:[#allocation5 + $0x68] sm:$0xff]
    %v61 = vld [vmem:[#allocation5 + $0x70] sm:$0xff]
    %v62 = vld [vmem:[#allocation5 + $0x78] sm:$0xff]
    %v63 = vld [vmem:[%s2] sm:$0x1]
    %v65 = vlaneseq
    %v66 = vshrl.u32 %v65, 7
    %v67 = vsub.s32 0, %v66
    %v68 = vrot.slane %v63, %v67
    %70 = vmatprep.subr.mxu0 0.0
    %71 = vmatpush1.msra.mxu0 %v47
    %72 = vmatprep.subr.mxu0 0.0
    %73 = vmatpush1.msra.mxu0 %v48
    %74 = vmatprep.subr.mxu0 0.0
    %75 = vmatpush1.msra.mxu0 %v49
    %76 = vmatprep.subr.mxu0 0.0
    %77 = vmatpush1.msra.mxu0 %v50
    %78 = vmatprep.subr.mxu0 0.0
    %79 = vmatpush1.msra.mxu0 %v51
    %80 = vmatprep.subr.mxu0 0.0
    %81 = vmatpush1.msra.mxu0 %v52
    %82 = vmatprep.subr.mxu0 0.0
    %83 = vmatpush1.msra.mxu0 %v53
    %84 = vmatprep.subr.mxu0 0.0
    %85 = vmatpush1.msra.mxu0 %v54
    %86 = vmatprep.subr.mxu0 0.0
    %87 = vmatpush1.msra.mxu0 %v55
    %88 = vmatprep.subr.mxu0 0.0
    %89 = vmatpush1.msra.mxu0 %v56
    %90 = vmatprep.subr.mxu0 0.0
    %91 = vmatpush1.msra.mxu0 %v57
    %92 = vmatprep.subr.mxu0 0.0
    %93 = vmatpush1.msra.mxu0 %v58
    %94 = vmatprep.subr.mxu0 0.0
    %95 = vmatpush1.msra.mxu0 %v59
    %96 = vmatprep.subr.mxu0 0.0
    %97 = vmatpush1.msra.mxu0 %v60
    %98 = vmatprep.subr.mxu0 0.0
    %99 = vmatpush1.msra.mxu0 %v61
    %100 = vmatprep.subr.mxu0 0.0
    %101 = vmatpush1.msra.mxu0 %v62
    %102 = vmatprep.subr.mxu0 0.0
    %103 = vmatpush1.msra.mxu0 0.0
    %104 = vmatprep.subr.mxu0 0.0
    %105 = vmatpush1.msra.mxu0 0.0
    %106 = vmatprep.subr.mxu0 0.0
    %107 = vmatpush1.msra.mxu0 0.0
    %108 = vmatprep.subr.mxu0 0.0
    %109 = vmatpush1.msra.mxu0 0.0
    %110 = vmatprep.subr.mxu0 0.0
    %111 = vmatpush1.msra.mxu0 0.0
    %112 = vmatprep.subr.mxu0 0.0
    %113 = vmatpush1.msra.mxu0 0.0
    %114 = vmatprep.subr.mxu0 0.0
    %115 = vmatpush1.msra.mxu0 0.0
    %116 = vmatprep.subr.mxu0 0.0
    %117 = vmatpush1.msra.mxu0 0.0
    %118 = vmatprep.subr.mxu0 0.0
    %119 = vmatpush1.msra.mxu0 0.0
    %120 = vmatprep.subr.mxu0 0.0
    %121 = vmatpush1.msra.mxu0 0.0
    %122 = vmatprep.subr.mxu0 0.0
    %123 = vmatpush1.msra.mxu0 0.0
    %124 = vmatprep.subr.mxu0 0.0
    %125 = vmatpush1.msra.mxu0 0.0
    %126 = vmatprep.subr.mxu0 0.0
    %127 = vmatpush1.msra.mxu0 0.0
    %128 = vmatprep.subr.mxu0 0.0
    %129 = vmatpush1.msra.mxu0 0.0
    %130 = vmatprep.subr.mxu0 0.0
    %131 = vmatpush1.msra.mxu0 0.0
    %132 = vmatprep.subr.mxu0 0.0
    %133 = vmatpush1.msra.mxu0 0.0
    %134 = vmatprep.mubr.f32.mxu0 0.0
    %135 = vmatmul.mubr.f32.gmra.mrb[0].mxu0 %v43
    %v136 = vpop.f32.mrb[0].mxu0
    %v137 = vadd.f32 %v68, %v136
    %v138 = vpop.f32.mrb[0].mxu0
    %139 = vmatprep.mubr.f32.mxu0 0.0
    %140 = vmatmul.mubr.f32.gmra.mrb[0].mxu0 %v44
    %v141 = vpop.f32.mrb[0].mxu0
    %v142 = vadd.f32 %v68, %v141
    %v143 = vpop.f32.mrb[0].mxu0
    %144 = vmatprep.mubr.f32.mxu0 0.0
    %145 = vmatmul.mubr.f32.gmra.mrb[0].mxu0 %v45
    %v146 = vpop.f32.mrb[0].mxu0
    %v147 = vadd.f32 %v68, %v146
    %v148 = vpop.f32.mrb[0].mxu0
    %149 = vmatprep.mubr.f32.mxu0 0.0
    %150 = vmatmul.mubr.f32.gmra.mrb[0].mxu0 %v46
    %v151 = vpop.f32.mrb[0].mxu0
    %v152 = vadd.f32 %v68, %v151
    %v153 = vpop.f32.mrb[0].mxu0
    %154 = vdwg.mxu0
    %v155 = vmul.f32 %v137, 1.442695
    %v156 = vpow.pop %v155
    %v157 = vmul.f32 %v142, 1.442695
    %v158 = vpow.pop %v157
    %v159 = vmul.f32 %v147, 1.442695
    %v160 = vpow.pop %v159
    %v161 = vmul.f32 %v152, 1.442695
    %v162 = vpow.pop %v161
    %v163 = vsub.f32 %v156, 1.0
    %v164 = vsub.f32 %v158, 1.0
    %v165 = vsub.f32 %v160, 1.0
    %v166 = vsub.f32 %v162, 1.0
    %v167 = vmul.f32 %v163, 1.6732632
    %v168 = vmul.f32 %v164, 1.6732632
    %v169 = vmul.f32 %v165, 1.6732632
    %v170 = vmul.f32 %v166, 1.6732632
    %vm171 = vcmp.gt.f32.partialorder %v137, 0.0
    %vm172 = vcmp.gt.f32.partialorder %v142, 0.0
    %vm173 = vcmp.gt.f32.partialorder %v147, 0.0
    %vm174 = vcmp.gt.f32.partialorder %v152, 0.0
    %v175 = vsel %vm171, %v137, %v167
    %v176 = vsel %vm172, %v142, %v168
    %v177 = vsel %vm173, %v147, %v169
    %v178 = vsel %vm174, %v152, %v170
    %v179 = vmul.f32 %v175, 1.050701
    %v180 = vmul.f32 %v176, 1.050701
    %v181 = vmul.f32 %v177, 1.050701
    %v182 = vmul.f32 %v178, 1.050701
    %183 = vst [vmem:[#allocation7] sm:$0xff] %v179
    %184 = vst [vmem:[#allocation7 + $0x8] sm:$0xff] %v180
    %185 = vst [vmem:[#allocation7 + $0x10] sm:$0xff] %v181
    %186 = vst [vmem:[#allocation7 + $0x18] sm:$0xff] %v182
    // Predicated region
    $region22: #{tpu_custom_call.1} parent=1 // pred_check
      _
    $region23: #{tpu_custom_call.1} parent=1 // pred_check_branch
      %188 = sbr.rel (0) target = $region25
    $region24: #{tpu_custom_call.1} parent=1 // pred_region
      %s190 = ssub.s32 512, 512
      %191 = vsyncadd [#allocation4], %s190
      %s192 = sshll.u32 [#allocation7], 4
      %s193 = int_to_ptr.vmem [resolvable:$true] %s192
      %198 = dma.vmem_to_hbm [thread:$0]  %s193, 512, %s3, [#allocation4], 128, 128, 8
    $region25: #{tpu_custom_call.1} parent=1 // pred_fallthru
      _
    // Predicated region
    $region26: #{tpu_custom_call.1} parent=1 // pred_check
      _
    $region27: #{tpu_custom_call.1} parent=1 // pred_check_branch
      %200 = sbr.rel (0) target = $region29
    $region28: #{tpu_custom_call.1} parent=1 // pred_region
      %201 = dma.done [#allocation4], 512
    $region29: #{tpu_custom_call.1} parent=1 // pred_fallthru
      _
    %202 = vsyncpa [#allocation3], 1
    %203 = vsyncpa [#allocation6], 1
    %204 = vsyncpa [#allocation4], 1

</llo_original>
